<compile_context>
chip_gen: v5e
topology: v5e:2x2
jax: 0.10.0
libtpu: 0.0.40
codegen_flags: <defaults>
</compile_context>

<pallas_src>
import jax
import jax.numpy as jnp
from jax.experimental import pallas as pl
from jax.experimental.pallas import tpu as pltpu

_LANE = 128


def _round_up(x, m):
    return ((x + m - 1) // m) * m


def _qkey_kernel(q_ref, wt_ref, b_ref, out_ref):
    # q_ref:  (B, q_dim)        all question vectors
    # wt_ref: (q_dim, p_dim)    linear weight, PRE-transposed in the wrapper
    # b_ref:  (1, p_dim)        bias
    # out_ref:(B, p_dim)        q_key for every batch, computed in ONE matmul
    out_ref[...] = (
        jnp.dot(q_ref[...], wt_ref[...], preferred_element_type=jnp.float32)
        + b_ref[...]
    ).astype(out_ref.dtype)


def _scores_kernel(qkey_ref, p_ref, mask_ref, out_ref):
    # qkey_ref: (B, 1, p_dim)  constant block (loaded once for the whole grid)
    # p_ref:    (B, TL, p_dim) current p_len tile of the passage hidden states
    # mask_ref: (B, 1, TL) i8  1 where pad token
    # out_ref:  (B, 1, TL) f32 lane-dense logits tile
    qk = qkey_ref[...].astype(p_ref.dtype)
    # scores[b, 0, l] = sum_d qk[b, 0, d] * p[b, l, d]
    # Contracts the last axis of BOTH operands -> no in-kernel transpose; result
    # is naturally lane-dense along TL.
    scores = jnp.einsum("bxd,bld->bxl", qk, p_ref[...],
                        preferred_element_type=jnp.float32)
    pad = mask_ref[...].astype(jnp.float32)
    out_ref[...] = jnp.where(pad != 0.0, -jnp.inf, scores).astype(out_ref.dtype)


def bilinear_output(p, q, p_mask, weight, bias, *, block_bytes=4 * 1024 * 1024):
    """p: [B, p_len, p_dim], q: [B, q_dim], p_mask: [B, p_len] bool (True = pad).
    weight: [p_dim, q_dim] (torch nn.Linear layout), bias: [p_dim].
    Returns logits [B, p_len] float32 (exactly -inf at masked positions)."""
    B, p_len, p_dim = p.shape
    q_dim = q.shape[1]
    assert weight.shape == (p_dim, q_dim) and bias.shape == (p_dim,)
    assert q.shape == (B, q_dim) and p_mask.shape == (B, p_len)

    # ---- Stage 1: q_key = q @ W^T + b, one batched MXU matmul (hoisted). ----
    wt = weight.T                        # (q_dim, p_dim), transposed once in XLA
    bias2d = bias.reshape(1, p_dim)
    q_key = pl.pallas_call(
        _qkey_kernel,
        out_shape=jax.ShapeDtypeStruct((B, p_dim), jnp.float32),
        grid_spec=pltpu.PrefetchScalarGridSpec(
            num_scalar_prefetch=0,
            grid=(1,),
            in_specs=[
                pl.BlockSpec((B, q_dim), lambda i: (0, 0)),
                pl.BlockSpec((q_dim, p_dim), lambda i: (0, 0)),
                pl.BlockSpec((1, p_dim), lambda i: (0, 0)),
            ],
            out_specs=pl.BlockSpec((B, p_dim), lambda i: (0, 0)),
        ),
        compiler_params=pltpu.CompilerParams(
            dimension_semantics=("arbitrary",)),
    )(q, wt, bias2d)
    q_key3 = q_key.reshape(B, 1, p_dim)   # metadata-only reshape in the wrapper

    # ---- Stage 2: masked bilinear scores, tiled over (padded) p_len. ----
    p_len_pad = _round_up(p_len, _LANE)
    itemsize = p.dtype.itemsize
    row_bytes = max(B * p_dim * itemsize, 1)          # bytes per p_len row of a block
    max_rows = max(_LANE, (block_bytes // row_bytes) // _LANE * _LANE)
    tl = _LANE
    cand = _LANE
    while cand <= min(p_len_pad, max_rows):
        if p_len_pad % cand == 0:
            tl = cand                                  # largest dividing multiple of 128
        cand += _LANE
    n_tiles = p_len_pad // tl

    pad = p_len_pad - p_len
    if pad:
        p_in = jnp.pad(p, ((0, 0), (0, pad), (0, 0)))
        mask_in = jnp.pad(p_mask, ((0, 0), (0, pad)), constant_values=True)
    else:
        p_in, mask_in = p, p_mask
    mask3 = mask_in.astype(jnp.int8).reshape(B, 1, p_len_pad)

    out3 = pl.pallas_call(
        _scores_kernel,
        out_shape=jax.ShapeDtypeStruct((B, 1, p_len_pad), jnp.float32),
        grid_spec=pltpu.PrefetchScalarGridSpec(
            num_scalar_prefetch=0,
            grid=(n_tiles,),
            in_specs=[
                pl.BlockSpec((B, 1, p_dim), lambda j: (0, 0, 0)),   # q_key (constant)
                pl.BlockSpec((B, tl, p_dim), lambda j: (0, j, 0)),  # p tile
                pl.BlockSpec((B, 1, tl), lambda j: (0, 0, j)),      # mask tile (i8)
            ],
            out_specs=pl.BlockSpec((B, 1, tl), lambda j: (0, 0, j)),
        ),
        compiler_params=pltpu.CompilerParams(
            dimension_semantics=("parallel",),          # megacore-shardable on v7x
            vmem_limit_bytes=32 * 1024 * 1024,          # blocks capped at ~4 MiB each
        ),
    )(q_key3, p_in, mask3)

    return out3.reshape(B, p_len_pad)[:, :p_len]


def bilinear_output_ref(p, q, p_mask, weight, bias):
    """Pure-JAX reference for correctness check."""
    q_key = q @ weight.T + bias                       # [B, p_dim]
    scores = jnp.einsum("bld,bd->bl", p, q_key)       # [B, p_len]
    return jnp.where(p_mask, -jnp.inf, scores)


if __name__ == "__main__":
    # Small shapes consistent with the module's forward (hidden*2-style dims).
    B, p_len, p_dim, q_dim = 2, 8, 32, 32

    key = jax.random.PRNGKey(0)
    kp, kq, kw, kb, km = jax.random.split(key, 5)

    p = jax.random.normal(kp, (B, p_len, p_dim), dtype=jnp.float32)
    q = jax.random.normal(kq, (B, q_dim), dtype=jnp.float32)
    # Pad mask: True where pad token (filled with -inf).
    p_mask = jax.random.bernoulli(km, p=0.25, shape=(B, p_len))

    # Deterministic nn.Linear-style init: U(-1/sqrt(q_dim), 1/sqrt(q_dim)).
    bound = 1.0 / (q_dim ** 0.5)
    weight = jax.random.uniform(kw, (p_dim, q_dim), jnp.float32, -bound, bound)
    bias = jax.random.uniform(kb, (p_dim,), jnp.float32, -bound, bound)

    out = bilinear_output(p, q, p_mask, weight, bias)
    out = jax.block_until_ready(out)

    ref = bilinear_output_ref(p, q, p_mask, weight, bias)
    finite = ~p_mask
    assert out.shape == (B, p_len)
    assert bool(jnp.all(jnp.isneginf(out) == p_mask))
    assert bool(jnp.allclose(jnp.where(finite, out, 0.0),
                             jnp.where(finite, ref, 0.0),
                             atol=1e-5, rtol=1e-5))
    print("KERNEL_OK")
</pallas_src>

<mosaic_0001>
module attributes {stable_mosaic.version = 11 : i64} {
  func.func @_qkey_kernel(%arg0: i32, %arg1: memref<2x32xf32, #tpu.memory_space<vmem>>, %arg2: memref<32x32xf32, #tpu.memory_space<vmem>>, %arg3: memref<1x32xf32, #tpu.memory_space<vmem>>, %arg4: memref<2x32xf32, #tpu.memory_space<vmem>>) attributes {dimension_semantics = [#tpu.dimension_semantics<arbitrary>], iteration_bounds = array<i64: 1>, scalar_prefetch = 0 : i64, scratch_operands = 0 : i64, tpu.core_type = #tpu.core_type<tc>, window_params = [{pipeline_mode = #tpu.pipeline_mode<synchronous>, transform_indices = @transform_0, window_bounds = array<i64: 2, 32>}, {pipeline_mode = #tpu.pipeline_mode<synchronous>, transform_indices = @transform_1, window_bounds = array<i64: 32, 32>}, {pipeline_mode = #tpu.pipeline_mode<synchronous>, transform_indices = @transform_2, window_bounds = array<i64: 1, 32>}, {pipeline_mode = #tpu.pipeline_mode<synchronous>, transform_indices = @transform_3, window_bounds = array<i64: 2, 32>}]} {
    %c0 = arith.constant 0 : index
    %c0_0 = arith.constant 0 : index
    %0 = vector.load %arg1[%c0, %c0_0] : memref<2x32xf32, #tpu.memory_space<vmem>>, vector<2x32xf32>
    %c0_1 = arith.constant 0 : index
    %c0_2 = arith.constant 0 : index
    %1 = vector.load %arg2[%c0_1, %c0_2] : memref<32x32xf32, #tpu.memory_space<vmem>>, vector<32x32xf32>
    %cst = arith.constant dense<0.000000e+00> : vector<2x32xf32>
    %2 = tpu.matmul %0, %1, %cst {dimension_numbers = #tpu.dot_dimension_numbers<[1], [0], [0], [1], [0, 0, 1, 1], [], []>} : vector<2x32xf32>, vector<32x32xf32>, vector<2x32xf32> -> vector<2x32xf32>
    %c0_3 = arith.constant 0 : index
    %c0_4 = arith.constant 0 : index
    %3 = vector.load %arg3[%c0_3, %c0_4] : memref<1x32xf32, #tpu.memory_space<vmem>>, vector<1x32xf32>
    %4 = vector.broadcast %3 : vector<1x32xf32> to vector<2x32xf32>
    %5 = arith.addf %2, %4 : vector<2x32xf32>
    %c0_5 = arith.constant 0 : index
    %c0_6 = arith.constant 0 : index
    %6 = vector.load %arg4[%c0_5, %c0_6] : memref<2x32xf32, #tpu.memory_space<vmem>>, vector<2x32xf32>
    tpu.vector_store %arg4[%c0_5, %c0_6], %5 {strides = array<i32>} : memref<2x32xf32, #tpu.memory_space<vmem>>, vector<2x32xf32>,
    return
  }
  func.func @transform_0(%arg0: i32) -> (i32, i32) {
    %c0_i32 = arith.constant 0 : i32
    %c0_i32_0 = arith.constant 0 : i32
    %c0_i32_1 = arith.constant 0 : i32
    return %c0_i32, %c0_i32_0 : i32, i32
  }
  func.func @transform_1(%arg0: i32) -> (i32, i32) {
    %c0_i32 = arith.constant 0 : i32
    %c0_i32_0 = arith.constant 0 : i32
    %c0_i32_1 = arith.constant 0 : i32
    return %c0_i32, %c0_i32_0 : i32, i32
  }
  func.func @transform_2(%arg0: i32) -> (i32, i32) {
    %c0_i32 = arith.constant 0 : i32
    %c0_i32_0 = arith.constant 0 : i32
    %c0_i32_1 = arith.constant 0 : i32
    return %c0_i32, %c0_i32_0 : i32, i32
  }
  func.func @transform_3(%arg0: i32) -> (i32, i32) {
    %c0_i32 = arith.constant 0 : i32
    %c0_i32_0 = arith.constant 0 : i32
    %c0_i32_1 = arith.constant 0 : i32
    return %c0_i32, %c0_i32_0 : i32, i32
  }
}

</mosaic_0001>

<llo_original>
// kernel: tpu_custom_call.1
$region0: #{tpu_custom_call.1}
  #allocation0 [shape = 'u32[]', space=smem, size = 0x4, offset = 0x4, fixed_abs, tag = 'smem constant byte address 0x4 - core index']
  #allocation1 [shape = 'u32[72,128]{1,0:T(1,128)}', space=vmem, size = 0x9000, scoped, tag = 'internal scratch']
  %s0 = inlined_call_operand.hbm [shape: f32[2,32], index: 0, kind: input, shape index: {}]
  %s1 = inlined_call_operand.hbm [shape: f32[32,32], index: 1, kind: input, shape index: {}]
  %s2 = inlined_call_operand.vmem [shape: f32[1,32], index: 2, kind: input, shape index: {}]
  %s3 = inlined_call_operand.hbm [shape: f32[2,32], index: 3, kind: output, shape index: {}]
  %s4 = sld [smem:[#allocation0]]
  $region30: #{tpu_custom_call.1} parent=0
    _
  %s6 = ssub.s32 1, %s4
  %s7 = scalar_select 0, %s6, %s4
  $region1: #{tpu_custom_call.1} parent=0
    #allocation2 [shape = 'u8[1024]{0}', space=vmem, size = 0x400, scoped, tag = 'input window, operand 0, single buffered']
    #allocation3 [shape = 's32[1]{0}', space=sflag, size = 0x4, scoped, tag = 'scoped memory for tpu_custom_call.1']
    #allocation4 [shape = 's32[1]{0}', space=sflag, size = 0x4, scoped, tag = 'scoped memory for tpu_custom_call.1']
    #allocation5 [shape = 'u8[16384]{0}', space=vmem, size = 0x4000, scoped, tag = 'input window, operand 1, single buffered']
    #allocation6 [shape = 's32[1]{0}', space=sflag, size = 0x4, scoped, tag = 'scoped memory for tpu_custom_call.1']
    #allocation7 [shape = 'u8[1024]{0}', space=vmem, size = 0x400, scoped, tag = 'output window, operand 0, single buffered']
    %8 = vsyncpa [#allocation3], 0
    %9 = vsyncpa [#allocation6], 0
    %10 = vsyncpa [#allocation4], 0
    // Predicated region
    $region2: #{tpu_custom_call.1} parent=1 // pred_check
      _
    $region3: #{tpu_custom_call.1} parent=1 // pred_check_branch
      %12 = sbr.rel (0) target = $region5
    $region4: #{tpu_custom_call.1} parent=1 // pred_region
      %14 = vsyncadd [#allocation3], 0
      %s16 = sshll.u32 %s0, 4
      %s17 = int_to_ptr.hbm [resolvable:$true] %s16
      %s18 = sshll.u32 [#allocation2], 4
      %s19 = int_to_ptr.vmem [resolvable:$true] %s18
      %21 = dma.hbm_to_vmem [thread:$0]  %s17, 32, %s19, [#allocation3]
    $region5: #{tpu_custom_call.1} parent=1 // pred_fallthru
      _
    // Predicated region
    $region6: #{tpu_custom_call.1} parent=1 // pred_check
      _
    $region7: #{tpu_custom_call.1} parent=1 // pred_check_branch
      %23 = sbr.rel (0) target = $region9
    $region8: #{tpu_custom_call.1} parent=1 // pred_region
      %25 = vsyncadd [#allocation6], 0
      %s26 = sshll.u32 %s1, 4
      %s27 = int_to_ptr.hbm [resolvable:$true] %s26
      %s28 = sshll.u32 [#allocation5], 4
      %s29 = int_to_ptr.vmem [resolvable:$true] %s28
      %34 = dma.hbm_to_vmem [thread:$0]  %s27, 512, %s29, [#allocation6], 128, 128, 8
    $region9: #{tpu_custom_call.1} parent=1 // pred_fallthru
      _
    // Predicated region
    $region10: #{tpu_custom_call.1} parent=1 // pred_check
      _
    $region11: #{tpu_custom_call.1} parent=1 // pred_check_branch
      %36 = sbr.rel (0) target = $region13
    $region12: #{tpu_custom_call.1} parent=1 // pred_region
      _
    $region13: #{tpu_custom_call.1} parent=1 // pred_fallthru
      _
    // Predicated region
    $region14: #{tpu_custom_call.1} parent=1 // pred_check
      _
    $region15: #{tpu_custom_call.1} parent=1 // pred_check_branch
      %38 = sbr.rel (0) target = $region17
    $region16: #{tpu_custom_call.1} parent=1 // pred_region
      %40 = dma.done [#allocation3], 32
    $region17: #{tpu_custom_call.1} parent=1 // pred_fallthru
      _
    // Predicated region
    $region18: #{tpu_custom_call.1} parent=1 // pred_check
      _
    $region19: #{tpu_custom_call.1} parent=1 // pred_check_branch
      %42 = sbr.rel (0) target = $region21
    $region20: #{tpu_custom_call.1} parent=1 // pred_region
      %44 = dma.done [#allocation6], 512
    $region21: #{tpu_custom_call.1} parent=1 // pred_fallthru
      _
    %v45 = vld [vmem:[#allocation2] sm:$0x3]
    %v46 = vld [vmem:[#allocation5] sm:$0xff]
    %v47 = vld [vmem:[#allocation5 + $0x8] sm:$0xff]
    %v48 = vld [vmem:[#allocation5 + $0x10] sm:$0xff]
    %v49 = vld [vmem:[#allocation5 + $0x18] sm:$0xff]
    %v50 = vld [vmem:[%s2] sm:$0x1]
    %v52 = vperm.slane %v50, 0
    %vm54 = vcmask 261120
    %v56 = vsel %vm54, %v45, 0
    %58 = vmatpush.msra.mxu0 0.0
    %59 = vmatpush.msra.mxu0 0.0
    %60 = vmatpush.msra.mxu0 0.0
    %61 = vmatpush.msra.mxu0 0.0
    %62 = vmatpush.msra.mxu0 0.0
    %63 = vmatpush.msra.mxu0 0.0
    %64 = vmatpush.msra.mxu0 0.0
    %65 = vmatpush.msra.mxu0 0.0
    %66 = vmatpush.msra.mxu0 0.0
    %67 = vmatpush.msra.mxu0 0.0
    %68 = vmatpush.msra.mxu0 0.0
    %69 = vmatpush.msra.mxu0 0.0
    %70 = vmatpush.msra.mxu0 %v49
    %71 = vmatpush.msra.mxu0 %v48
    %72 = vmatpush.msra.mxu0 %v47
    %73 = vmatpush.msra.mxu0 %v46
    %74 = vmatmul.f32.gmra.mxu0 %v56
    %v75 = vpop.f32.mrf.mxu0
    %v76 = vadd.f32 %v52, %v75
    %77 = vdwg.mxu0
    %vm78 = vcmask 254976
    %79 = vst.msk [vmem:[#allocation7] sm:$0x3] %vm78, %v76
    // Predicated region
    $region22: #{tpu_custom_call.1} parent=1 // pred_check
      _
    $region23: #{tpu_custom_call.1} parent=1 // pred_check_branch
      %81 = sbr.rel (0) target = $region25
    $region24: #{tpu_custom_call.1} parent=1 // pred_region
      %83 = vsyncadd [#allocation4], 0
      %s85 = sshll.u32 [#allocation7], 4
      %s86 = int_to_ptr.vmem [resolvable:$true] %s85
      %s87 = sshll.u32 %s3, 4
      %s88 = int_to_ptr.hbm [resolvable:$true] %s87
      %90 = dma.vmem_to_hbm [thread:$0]  %s86, 32, %s88, [#allocation4]
    $region25: #{tpu_custom_call.1} parent=1 // pred_fallthru
      _
    // Predicated region
    $region26: #{tpu_custom_call.1} parent=1 // pred_check
      _
    $region27: #{tpu_custom_call.1} parent=1 // pred_check_branch
      %92 = sbr.rel (0) target = $region29
    $region28: #{tpu_custom_call.1} parent=1 // pred_region
      %94 = dma.done [#allocation4], 32
    $region29: #{tpu_custom_call.1} parent=1 // pred_fallthru
      _
    %95 = vsyncpa [#allocation3], 1
    %96 = vsyncpa [#allocation6], 1
    %97 = vsyncpa [#allocation4], 1

</llo_original>
